<compile_context>
chip_gen: v5e
topology: v5e:2x2
jax: 0.10.0
libtpu: 0.0.40
codegen_flags: <defaults>
</compile_context>

<pallas_src>
import jax
import jax.numpy as jnp
import numpy as np
from jax.experimental import pallas as pl
from jax.experimental.pallas import tpu as pltpu

_LANE = 128
_EPS = 1e-20


def _round_up(x, m):
    return (x + m - 1) // m * m


def _cdiv(a, b):
    return (a + b - 1) // b


def _vmem_capacity_bytes():
    """Physical per-core VMEM, with a conservative (v7x-sized) fallback."""
    try:
        info = pltpu.get_tpu_info()
        cap = int(getattr(info, "vmem_capacity_bytes", 0))
        if cap > 0:
            return cap
    except Exception:
        pass
    return 64 * 1024 * 1024


def _risk_set_kernel(risk_i_ref, t_i_ref, t_row_ref, risk_j_ref, ind_ref,
                     out_ref, rs_ref):
    """One (j-block, i-chunk) grid step of the Cox risk-set computation.

    grid = (n_j_blocks [parallel], n_i_chunks [arbitrary]).  The risk-set
    accumulator rs_ref (1, jb) lives in VMEM scratch and is reduced over the
    inner i axis; the per-sample numerator terms are written once per j block.
    """
    ic = pl.program_id(1)

    @pl.when(ic == 0)
    def _init():
        rs_ref[...] = jnp.zeros_like(rs_ref)

    # (chunk, 1) column of exp(risk - max); -inf-padded rows give exactly 0.
    exp_col = jnp.exp(risk_i_ref[...])
    t_col = t_i_ref[...]                        # (chunk, 1)
    t_row = t_row_ref[...]                      # (1, jb)
    # Fused VPU compare/select (no materialized mask, no MXU): sample i
    # contributes exp(risk[i]-max) to risk set j iff t[j] <= t[i].
    contrib = jnp.where(t_col >= t_row, exp_col, 0.0)       # (chunk, jb)
    rs_ref[...] += jnp.sum(contrib, axis=0, keepdims=True)

    @pl.when(ic == pl.num_programs(1) - 1)
    def _finalize():
        log_loss = jnp.log(rs_ref[...] + _EPS)   # max-risk already folded out
        out_ref[...] = (risk_j_ref[...] - log_loss) * ind_ref[...]


def partial_likelihood(risk_pred, true_times, true_indicator, weight, *,
                       c1=1e-4, order='2', reduction='mean'):
    """Cox partial likelihood NLL + weight regularization, computed in Pallas."""
    assert reduction in ('mean', 'sum'), "reduction must be one of 'mean', 'sum'"
    if order not in ('1', '2', '21'):
        raise ValueError("Order must be one of '1', '2', '21'")

    risk = jnp.reshape(risk_pred, (-1,)).astype(jnp.float32)
    t = jnp.reshape(true_times, (-1,)).astype(jnp.float32)
    e = jnp.reshape(true_indicator, (-1,)).astype(jnp.float32)
    n = risk.shape[0]

    # --- generation-aware tiling ---------------------------------------------
    vmem_cap = _vmem_capacity_bytes()
    big_vmem = vmem_cap >= 96 * 1024 * 1024            # v5e / v6e (128 MiB VMEM)
    slab_bytes = (8 if big_vmem else 2) * 1024 * 1024  # per-chunk select slab
    vmem_limit = (64 if big_vmem else 28) * 1024 * 1024

    # j (lane) axis: lane-dense blocks of <= 1024 columns; with >1 block the
    # leading grid axis is "parallel" so both v7x TensorCores are used.
    n_pad_128 = _round_up(n, _LANE)
    n_jb = _cdiv(n_pad_128, 1024)
    jb = _round_up(_cdiv(n_pad_128, n_jb), _LANE)
    n_pad_j = jb * n_jb

    # i (reduction) axis: chunk rows per grid step so one (chunk, jb) f32
    # select slab stays around `slab_bytes`.
    chunk = max(8, min(1024, (slab_bytes // (4 * jb)) // 8 * 8, _round_up(n, 8)))
    n_ic = _cdiv(n, chunk)
    n_pad_i = n_ic * chunk

    # max-risk shift is O(N): keep it in XLA, so the kernel needs no scalar.
    max_risk = jnp.max(risk)
    risk_s = risk - max_risk

    # i-axis columns: padded rows must drop out of every risk set -> pad the
    # shifted risk with -inf (exp -> exactly 0); time padding is then irrelevant.
    risk_i_col = jnp.pad(risk_s, (0, n_pad_i - n),
                         constant_values=float('-inf')).reshape(n_pad_i, 1)
    t_i_col = jnp.pad(t, (0, n_pad_i - n)).reshape(n_pad_i, 1)
    # j-axis rows: padded columns are excluded via indicator = 0; risk padded
    # with 0 (finite) so (risk - log_loss) * 0 stays 0, never NaN.
    t_row = jnp.pad(t, (0, n_pad_j - n)).reshape(1, n_pad_j)
    risk_j_row = jnp.pad(risk_s, (0, n_pad_j - n)).reshape(1, n_pad_j)
    ind_row = jnp.pad(e, (0, n_pad_j - n)).reshape(1, n_pad_j)

    terms = pl.pallas_call(
        _risk_set_kernel,
        out_shape=jax.ShapeDtypeStruct((1, n_pad_j), jnp.float32),
        grid=(n_jb, n_ic),
        in_specs=[
            pl.BlockSpec((chunk, 1), lambda j, i: (i, 0)),   # shifted risk (i cols)
            pl.BlockSpec((chunk, 1), lambda j, i: (i, 0)),   # times (i cols)
            pl.BlockSpec((1, jb), lambda j, i: (0, j)),      # times (j row)
            pl.BlockSpec((1, jb), lambda j, i: (0, j)),      # shifted risk (j row)
            pl.BlockSpec((1, jb), lambda j, i: (0, j)),      # indicator (j row)
        ],
        out_specs=pl.BlockSpec((1, jb), lambda j, i: (0, j)),
        scratch_shapes=[pltpu.VMEM((1, jb), jnp.float32)],
        compiler_params=pltpu.CompilerParams(
            dimension_semantics=("parallel", "arbitrary"),
            vmem_limit_bytes=vmem_limit),
    )(risk_i_col, t_i_col, t_row, risk_j_row, ind_row)

    # --- O(N)/O(1) epilogue + regularization in XLA ---------------------------
    numer = jnp.sum(terms)            # padded columns contribute exactly 0
    denom = jnp.sum(e)
    nll = -numer / denom
    if reduction == 'mean':
        nll = nll / n
    # 'sum' leaves nll unchanged (matches the PyTorch module)

    w = weight.astype(jnp.float32)
    if w.ndim == 1:
        w = w.reshape(1, -1)
    if order == '1':
        reg = 0.5 * c1 * jnp.sum(jnp.abs(w))
    elif order == '2':
        reg = 0.5 * c1 * jnp.sum(w * w)
    else:  # '21'
        reg = 0.5 * c1 * jnp.sum(jnp.sqrt(jnp.sum(w * w, axis=1)))

    return nll + reg


def _reference(risk_pred, true_times, true_indicator, weight, *,
               c1=1e-4, order='2', reduction='mean'):
    eps = 1e-20
    r = jnp.reshape(risk_pred, (-1, 1)).astype(jnp.float32)
    t = jnp.reshape(true_times, (-1, 1)).astype(jnp.float32)
    e = jnp.reshape(true_indicator, (-1, 1)).astype(jnp.float32)
    n = r.shape[0]
    mask = jnp.where((t.T - t) > 0, 0.0, 1.0)
    max_risk = jnp.max(r)
    ll = jnp.sum(jnp.exp(r - max_risk) * mask, axis=0)
    ll = jnp.log(ll + eps).reshape(-1, 1) + max_risk
    nll = -jnp.sum((r - ll) * e) / jnp.sum(e)
    if reduction == 'mean':
        nll = nll / n
    if order == '2':
        nll = nll + c1 / 2 * jnp.sum(weight ** 2)
    elif order == '1':
        nll = nll + c1 / 2 * jnp.sum(jnp.abs(weight))
    else:
        nll = nll + c1 / 2 * jnp.sum(jnp.sqrt(jnp.sum(weight ** 2, axis=1)))
    return nll


if __name__ == "__main__":
    key = jax.random.PRNGKey(0)
    k_x, k_w, k_b, k_t, k_e = jax.random.split(key, 5)

    N, D = 8, 32                       # batch of 8 samples, hidden size 32
    # Synthetic "model": one linear layer risk_pred = x @ W.T + b
    W = jax.random.normal(k_w, (1, D), dtype=jnp.float32) * 0.1   # the 'weight'
    b = jax.random.normal(k_b, (1,), dtype=jnp.float32) * 0.1     # the 'bias'
    x = jax.random.normal(k_x, (N, D), dtype=jnp.float32)
    risk_pred = x @ W.T + b                                       # (N, 1)

    true_times = jax.random.uniform(k_t, (N,), minval=0.1, maxval=10.0)
    true_indicator = (jax.random.uniform(k_e, (N,)) > 0.4).astype(jnp.float32)
    true_indicator = true_indicator.at[0].set(1.0)  # guarantee sum > 0

    # primary small-shape check (order='2', mean)
    loss = partial_likelihood(risk_pred, true_times, true_indicator, W,
                              c1=1e-4, order='2', reduction='mean')
    loss = jax.block_until_ready(loss)
    ref = _reference(risk_pred, true_times, true_indicator, W,
                     c1=1e-4, order='2', reduction='mean')
    np.testing.assert_allclose(np.asarray(loss), np.asarray(ref),
                               rtol=1e-4, atol=1e-6)

    # exercise the '21' reg branch and 'sum' reduction at the same small shape
    loss21 = partial_likelihood(risk_pred, true_times, true_indicator, W,
                                c1=1e-3, order='21', reduction='sum')
    loss21 = jax.block_until_ready(loss21)
    ref21 = _reference(risk_pred, true_times, true_indicator, W,
                       c1=1e-3, order='21', reduction='sum')
    np.testing.assert_allclose(np.asarray(loss21), np.asarray(ref21),
                               rtol=1e-4, atol=1e-6)

    # exercise the multi-(j-block, i-chunk) grid path with padding on both axes
    k2 = jax.random.split(jax.random.PRNGKey(1), 3)
    N2 = 1800
    risk2 = jax.random.normal(k2[0], (N2,), dtype=jnp.float32)
    t2 = jax.random.uniform(k2[1], (N2,), minval=0.1, maxval=10.0)
    e2 = (jax.random.uniform(k2[2], (N2,)) > 0.4).astype(jnp.float32)
    e2 = e2.at[0].set(1.0)
    loss2 = partial_likelihood(risk2, t2, e2, W,
                               c1=1e-4, order='2', reduction='mean')
    loss2 = jax.block_until_ready(loss2)
    ref2 = _reference(risk2, t2, e2, W, c1=1e-4, order='2', reduction='mean')
    np.testing.assert_allclose(np.asarray(loss2), np.asarray(ref2),
                               rtol=1e-4, atol=1e-5)

    print("KERNEL_OK")
</pallas_src>

<mosaic_0001>
module attributes {stable_mosaic.version = 11 : i64} {
  func.func @_risk_set_kernel(%arg0: i32, %arg1: i32, %arg2: memref<8x1xf32, #tpu.memory_space<vmem>>, %arg3: memref<8x1xf32, #tpu.memory_space<vmem>>, %arg4: memref<1x128xf32, #tpu.memory_space<vmem>>, %arg5: memref<1x128xf32, #tpu.memory_space<vmem>>, %arg6: memref<1x128xf32, #tpu.memory_space<vmem>>, %arg7: memref<1x128xf32, #tpu.memory_space<vmem>>, %arg8: memref<1x128xf32, #tpu.memory_space<vmem>>) attributes {dimension_semantics = [#tpu.dimension_semantics<parallel>, #tpu.dimension_semantics<arbitrary>], iteration_bounds = array<i64: 1, 1>, scalar_prefetch = 0 : i64, scratch_operands = 1 : i64, tpu.core_type = #tpu.core_type<tc>, window_params = [{transform_indices = @transform_0, window_bounds = array<i64: 8, 1>}, {transform_indices = @transform_1, window_bounds = array<i64: 8, 1>}, {transform_indices = @transform_2, window_bounds = array<i64: 1, 128>}, {transform_indices = @transform_3, window_bounds = array<i64: 1, 128>}, {transform_indices = @transform_4, window_bounds = array<i64: 1, 128>}, {transform_indices = @transform_5, window_bounds = array<i64: 1, 128>}]} {
    %c0_i32 = arith.constant 0 : i32
    %0 = arith.cmpi eq, %arg1, %c0_i32 : i32
    %1 = arith.extui %0 : i1 to i32
    %c0_i32_0 = arith.constant 0 : i32
    %2 = arith.cmpi ne, %1, %c0_i32_0 : i32
    scf.if %2 {
      %cst_13 = arith.constant 0.000000e+00 : f32
      %22 = vector.broadcast %cst_13 : f32 to vector<1x128xf32>
      %c0_14 = arith.constant 0 : index
      %c0_15 = arith.constant 0 : index
      %23 = vector.load %arg8[%c0_14, %c0_15] : memref<1x128xf32, #tpu.memory_space<vmem>>, vector<1x128xf32>
      tpu.vector_store %arg8[%c0_14, %c0_15], %22 {strides = array<i32>} : memref<1x128xf32, #tpu.memory_space<vmem>>, vector<1x128xf32>,
    } else {
    }
    %c0 = arith.constant 0 : index
    %c0_1 = arith.constant 0 : index
    %3 = vector.load %arg2[%c0, %c0_1] : memref<8x1xf32, #tpu.memory_space<vmem>>, vector<8x1xf32>
    %4 = math.exp %3 : vector<8x1xf32>
    %c0_2 = arith.constant 0 : index
    %c0_3 = arith.constant 0 : index
    %5 = vector.load %arg3[%c0_2, %c0_3] : memref<8x1xf32, #tpu.memory_space<vmem>>, vector<8x1xf32>
    %c0_4 = arith.constant 0 : index
    %c0_5 = arith.constant 0 : index
    %6 = vector.load %arg4[%c0_4, %c0_5] : memref<1x128xf32, #tpu.memory_space<vmem>>, vector<1x128xf32>
    %7 = vector.broadcast %5 : vector<8x1xf32> to vector<8x128xf32>
    %8 = vector.broadcast %6 : vector<1x128xf32> to vector<8x128xf32>
    %9 = arith.cmpf oge, %7, %8 : vector<8x128xf32>
    %cst = arith.constant 0.000000e+00 : f32
    %10 = vector.shape_cast %4 : vector<8x1xf32> to vector<8x1xf32>
    %11 = vector.broadcast %10 : vector<8x1xf32> to vector<8x128xf32>
    %12 = vector.broadcast %cst : f32 to vector<8x128xf32>
    %13 = arith.select %9, %11, %12 : vector<8x128xi1>, vector<8x128xf32>
    %c0_6 = arith.constant 0 : index
    %c0_7 = arith.constant 0 : index
    %14 = vector.load %arg8[%c0_6, %c0_7] : memref<1x128xf32, #tpu.memory_space<vmem>>, vector<1x128xf32>
    %cst_8 = arith.constant dense<0.000000e+00> : vector<128xf32>
    %15 = vector.multi_reduction <add>, %13, %cst_8 [0] : vector<8x128xf32> to vector<128xf32>
    %16 = vector.shape_cast %15 : vector<128xf32> to vector<1x128xf32>
    %17 = arith.addf %14, %16 : vector<1x128xf32>
    %c0_9 = arith.constant 0 : index
    %c0_10 = arith.constant 0 : index
    %18 = vector.load %arg8[%c0_9, %c0_10] : memref<1x128xf32, #tpu.memory_space<vmem>>, vector<1x128xf32>
    tpu.vector_store %arg8[%c0_9, %c0_10], %17 {strides = array<i32>} : memref<1x128xf32, #tpu.memory_space<vmem>>, vector<1x128xf32>,
    %c0_i32_11 = arith.constant 0 : i32
    %19 = arith.cmpi eq, %arg1, %c0_i32_11 : i32
    %20 = arith.extui %19 : i1 to i32
    %c0_i32_12 = arith.constant 0 : i32
    %21 = arith.cmpi ne, %20, %c0_i32_12 : i32
    scf.if %21 {
      %c0_13 = arith.constant 0 : index
      %c0_14 = arith.constant 0 : index
      %22 = vector.load %arg8[%c0_13, %c0_14] : memref<1x128xf32, #tpu.memory_space<vmem>>, vector<1x128xf32>
      %cst_15 = arith.constant 9.99999968E-21 : f32
      %23 = vector.broadcast %cst_15 : f32 to vector<1x128xf32>
      %24 = arith.addf %22, %23 : vector<1x128xf32>
      %25 = math.log %24 : vector<1x128xf32>
      %c0_16 = arith.constant 0 : index
      %c0_17 = arith.constant 0 : index
      %26 = vector.load %arg5[%c0_16, %c0_17] : memref<1x128xf32, #tpu.memory_space<vmem>>, vector<1x128xf32>
      %27 = arith.subf %26, %25 : vector<1x128xf32>
      %c0_18 = arith.constant 0 : index
      %c0_19 = arith.constant 0 : index
      %28 = vector.load %arg6[%c0_18, %c0_19] : memref<1x128xf32, #tpu.memory_space<vmem>>, vector<1x128xf32>
      %29 = arith.mulf %27, %28 : vector<1x128xf32>
      %c0_20 = arith.constant 0 : index
      %c0_21 = arith.constant 0 : index
      %30 = vector.load %arg7[%c0_20, %c0_21] : memref<1x128xf32, #tpu.memory_space<vmem>>, vector<1x128xf32>
      tpu.vector_store %arg7[%c0_20, %c0_21], %29 {strides = array<i32>} : memref<1x128xf32, #tpu.memory_space<vmem>>, vector<1x128xf32>,
    } else {
    }
    return
  }
  func.func @transform_0(%arg0: i32, %arg1: i32) -> (i32, i32) {
    %c0_i32 = arith.constant 0 : i32
    %c0_i32_0 = arith.constant 0 : i32
    return %arg1, %c0_i32 : i32, i32
  }
  func.func @transform_1(%arg0: i32, %arg1: i32) -> (i32, i32) {
    %c0_i32 = arith.constant 0 : i32
    %c0_i32_0 = arith.constant 0 : i32
    return %arg1, %c0_i32 : i32, i32
  }
  func.func @transform_2(%arg0: i32, %arg1: i32) -> (i32, i32) {
    %c0_i32 = arith.constant 0 : i32
    %c0_i32_0 = arith.constant 0 : i32
    return %c0_i32, %arg0 : i32, i32
  }
  func.func @transform_3(%arg0: i32, %arg1: i32) -> (i32, i32) {
    %c0_i32 = arith.constant 0 : i32
    %c0_i32_0 = arith.constant 0 : i32
    return %c0_i32, %arg0 : i32, i32
  }
  func.func @transform_4(%arg0: i32, %arg1: i32) -> (i32, i32) {
    %c0_i32 = arith.constant 0 : i32
    %c0_i32_0 = arith.constant 0 : i32
    return %c0_i32, %arg0 : i32, i32
  }
  func.func @transform_5(%arg0: i32, %arg1: i32) -> (i32, i32) {
    %c0_i32 = arith.constant 0 : i32
    %c0_i32_0 = arith.constant 0 : i32
    return %c0_i32, %arg0 : i32, i32
  }
}

</mosaic_0001>

<llo_original>
// kernel: tpu_custom_call.1
$region0: #{tpu_custom_call.1}
  #allocation0 [shape = 'u32[]', space=smem, size = 0x4, offset = 0x4, fixed_abs, tag = 'smem constant byte address 0x4 - core index']
  #allocation1 [shape = 'u32[72,128]{1,0:T(1,128)}', space=vmem, size = 0x9000, scoped, tag = 'internal scratch']
  #allocation2 [shape = 'f32[1,128]{1,0:T(1,128)}', space=vmem, size = 0x200, scoped, tag = 'scratch operand']
  %s0 = inlined_call_operand.vmem [shape: f32[8,1], index: 0, kind: input, shape index: {}]
  %s1 = inlined_call_operand.vmem [shape: f32[8,1], index: 1, kind: input, shape index: {}]
  %s2 = inlined_call_operand.vmem [shape: f32[1,128], index: 2, kind: input, shape index: {}]
  %s3 = inlined_call_operand.vmem [shape: f32[1,128], index: 3, kind: input, shape index: {}]
  %s4 = inlined_call_operand.vmem [shape: f32[1,128], index: 4, kind: input, shape index: {}]
  %s5 = inlined_call_operand.hbm [shape: f32[1,128], index: 5, kind: output, shape index: {}]
  %s6 = sld [smem:[#allocation0]]
  $region38: #{tpu_custom_call.1} parent=0
    _
  %s8 = ssub.s32 1, %s6
  %s9 = scalar_select 0, %s8, %s6
  $region1: #{tpu_custom_call.1} parent=0
    #allocation3 [shape = 'u8[512]{0}', space=vmem, size = 0x400, scoped, tag = 'output window, operand 0, single buffered']
    #allocation4 [shape = 's32[1]{0}', space=sflag, size = 0x4, scoped, tag = 'scoped memory for tpu_custom_call.1']
    %10 = vsyncpa [#allocation4], 0
    // Predicated region
    $region2: #{tpu_custom_call.1} parent=1 // pred_check
      _
    $region3: #{tpu_custom_call.1} parent=1 // pred_check_branch
      %12 = sbr.rel (0) target = $region5
    $region4: #{tpu_custom_call.1} parent=1 // pred_region
      _
    $region5: #{tpu_custom_call.1} parent=1 // pred_fallthru
      _
    // Predicated region
    $region6: #{tpu_custom_call.1} parent=1 // pred_check
      _
    $region7: #{tpu_custom_call.1} parent=1 // pred_check_branch
      %14 = sbr.rel (0) target = $region9
    $region8: #{tpu_custom_call.1} parent=1 // pred_region
      _
    $region9: #{tpu_custom_call.1} parent=1 // pred_fallthru
      _
    // Predicated region
    $region10: #{tpu_custom_call.1} parent=1 // pred_check
      _
    $region11: #{tpu_custom_call.1} parent=1 // pred_check_branch
      %16 = sbr.rel (0) target = $region13
    $region12: #{tpu_custom_call.1} parent=1 // pred_region
      _
    $region13: #{tpu_custom_call.1} parent=1 // pred_fallthru
      _
    // Predicated region
    $region14: #{tpu_custom_call.1} parent=1 // pred_check
      _
    $region15: #{tpu_custom_call.1} parent=1 // pred_check_branch
      %18 = sbr.rel (0) target = $region17
    $region16: #{tpu_custom_call.1} parent=1 // pred_region
      _
    $region17: #{tpu_custom_call.1} parent=1 // pred_fallthru
      _
    // Predicated region
    $region18: #{tpu_custom_call.1} parent=1 // pred_check
      _
    $region19: #{tpu_custom_call.1} parent=1 // pred_check_branch
      %20 = sbr.rel (0) target = $region21
    $region20: #{tpu_custom_call.1} parent=1 // pred_region
      _
    $region21: #{tpu_custom_call.1} parent=1 // pred_fallthru
      _
    %p21 = scmp.eq.s32.totalorder 0, 0
    // Predicated region
    $region22: #{tpu_custom_call.1} parent=1 // pred_check
      %p22 = pneg %p21
    $region23: #{tpu_custom_call.1} parent=1 // pred_check_branch
      %24 = sbr.rel (%p22) target = $region25
    $region24: #{tpu_custom_call.1} parent=1 // pred_region
      %25 = vst [vmem:[#allocation2] sm:$0x1] 0.0
    $region25: #{tpu_custom_call.1} parent=1 // pred_fallthru
      _
    %v26 = vld [vmem:[%s0] sm:$0xff]
    %v27 = vmul.f32 %v26, 1.442695
    %v28 = vpow.pop %v27
    %v29 = vld [vmem:[%s1] sm:$0xff]
    %v30 = vld [vmem:[%s2] sm:$0x1]
    %32 = vset.pattern.permute.xlu0 0
    %33 = vperm.xlu0 %32, %v29
    %v34 = vpop.permute.xlu0 %33
    %v37 = vperm.slane %v30, 0
    %vm39 = vcmp.ge.f32.partialorder %v34, %v37
    %41 = vset.pattern.permute.xlu0 0
    %42 = vperm.xlu0 %41, %v28
    %v43 = vpop.permute.xlu0 %42
    %v45 = vsel %vm39, %v43, 0.0
    %v46 = vld [vmem:[#allocation2] sm:$0x1]
    %v47 = vrot.slane %v45, 4
    %v48 = vadd.f32 %v45, %v47
    %v49 = vrot.slane %v48, 2
    %v50 = vadd.f32 %v48, %v49
    %v51 = vrot.slane %v50, 1
    %v52 = vadd.f32 %v50, %v51
    %v53 = vadd.f32 %v46, %v52
    %54 = vst [vmem:[#allocation2] sm:$0x1] %v53
    // Predicated region
    $region26: #{tpu_custom_call.1} parent=1 // pred_check
      %p55 = pneg %p21
    $region27: #{tpu_custom_call.1} parent=1 // pred_check_branch
      %57 = sbr.rel (%p55) target = $region29
    $region28: #{tpu_custom_call.1} parent=1 // pred_region
      %v58 = vld [vmem:[#allocation2] sm:$0x1]
      %v59 = vadd.f32 %v58, 1e-20
      %v60 = vlog2.pop %v59
      %v61 = vmul.f32 %v60, 0.6931472
      %v62 = vld [vmem:[%s3] sm:$0x1]
      %v63 = vsub.f32 %v62, %v61
      %v64 = vld [vmem:[%s4] sm:$0x1]
      %v65 = vmul.f32 %v63, %v64
      %66 = vst [vmem:[#allocation3] sm:$0x1] %v65
    $region29: #{tpu_custom_call.1} parent=1 // pred_fallthru
      _
    // Predicated region
    $region30: #{tpu_custom_call.1} parent=1 // pred_check
      _
    $region31: #{tpu_custom_call.1} parent=1 // pred_check_branch
      %68 = sbr.rel (0) target = $region33
    $region32: #{tpu_custom_call.1} parent=1 // pred_region
      %70 = vsyncadd [#allocation4], 0
      %s72 = sshll.u32 [#allocation3], 4
      %s73 = int_to_ptr.vmem [resolvable:$true] %s72
      %s74 = sshll.u32 %s5, 4
      %s75 = int_to_ptr.hbm [resolvable:$true] %s74
      %77 = dma.vmem_to_hbm [thread:$0]  %s73, 16, %s75, [#allocation4]
    $region33: #{tpu_custom_call.1} parent=1 // pred_fallthru
      _
    // Predicated region
    $region34: #{tpu_custom_call.1} parent=1 // pred_check
      _
    $region35: #{tpu_custom_call.1} parent=1 // pred_check_branch
      %79 = sbr.rel (0) target = $region37
    $region36: #{tpu_custom_call.1} parent=1 // pred_region
      %81 = dma.done [#allocation4], 16
    $region37: #{tpu_custom_call.1} parent=1 // pred_fallthru
      _
    %82 = vsyncpa [#allocation4], 1

</llo_original>
